<compile_context>
chip_gen: v7x
topology: tpu7x:2x2x1
jax: 0.10.0
libtpu: 0.0.40
codegen_flags: <defaults>
</compile_context>

<pallas_src>
import jax
import jax.numpy as jnp
from jax import lax
from jax.experimental import pallas as pl
from jax.experimental.pallas import tpu as pltpu


def _pwce_kernel(logits_ref, tgt_ref, w_ref, cw_ref, out_ref):
    x = logits_ref[0].astype(jnp.float32)                  # (C, TS)
    C, TS = x.shape

    # log_softmax over the channel axis (axis 0 of the slab == dim=1 in NCDHW)
    m = jnp.max(x, axis=0, keepdims=True)                  # (1, TS)
    sh = x - m
    lse = jnp.log(jnp.sum(jnp.exp(sh), axis=0, keepdims=True))
    logp = sh - lse                                        # (C, TS)

    # Fused one-hot: select the target channel's log-prob, apply class weight.
    tgt = tgt_ref[0]                                       # (1, TS) int32
    ch = lax.broadcasted_iota(jnp.int32, (C, TS), 0)
    cw = cw_ref[...].astype(jnp.float32)                   # (C, 1)
    picked = jnp.where(ch == tgt, logp, 0.0) * cw          # (C, TS)

    w = w_ref[0].astype(jnp.float32)                       # (1, TS) or (C, TS)
    if w.shape[0] == 1:
        # Common case (N == 1): per-pixel weight broadcast over channels ->
        # multiply the (1, TS) row AFTER the channel (sublane) reduction.
        row = jnp.sum(picked, axis=0, keepdims=True) * w   # (1, TS)
    else:
        # Torch N == C expand_as quirk: weight is indexed by CHANNEL.
        row = jnp.sum(picked * w, axis=0, keepdims=True)   # (1, TS)

    # Per-tile partial sum (single cross-lane reduce per grid step).
    partial = jnp.sum(row, axis=1, keepdims=True)          # (1, 1)
    out_ref[0] = -partial                                  # (1,1,1) block


def _pick_tile_s(S, max_tile):
    """Largest divisor of S that is <= max_tile, preferring lane-aligned tiles."""
    cap = max(1, min(int(max_tile), S))
    fallback = 0
    for ts in range(cap, 0, -1):
        if S % ts == 0:
            if ts == S or ts % 128 == 0:
                return ts
            if fallback == 0:
                fallback = ts
    return fallback if fallback else S


def pixel_wise_cross_entropy_loss(logits, target, weights, class_weights=None,
                                  *, tile_s=None):
    """logits: (N, C, D, H, W) float; target/weights: (N, D, H, W)."""
    N, C, D, H, W = logits.shape
    assert target.shape == (N, D, H, W)
    assert weights.shape == (N, D, H, W)
    S = D * H * W

    if class_weights is None:
        class_weights = jnp.ones((C,), jnp.float32)

    # Keep input dtypes on the wire (bf16 logits stay bf16); cast in-kernel.
    x = logits.reshape(N, C, S)
    t = target.reshape(N, 1, S).astype(jnp.int32)
    cw = jnp.asarray(class_weights).reshape(C, 1).astype(jnp.float32)

    # weights.unsqueeze(0).expand_as(input) is only valid for N == 1 (per-pixel
    # weight broadcast over channels) or N == C (torch quirk: the weight ends
    # up indexed by CHANNEL and shared across the batch).  Neither case needs
    # the (N, C, S) broadcast materialized in HBM.
    if N == 1:
        w_in = weights.reshape(N, 1, S)
        w_chan = 1
        w_map = lambda n, s: (n, 0, s)
    elif N == C:
        w_in = weights.reshape(1, C, S)
        w_chan = C
        w_map = lambda n, s: (0, 0, s)
    else:
        raise ValueError(
            "weights.unsqueeze(0).expand_as(input) requires N == 1 or N == C")

    x_bytes = x.dtype.itemsize
    w_bytes = w_in.dtype.itemsize
    per_s = C * x_bytes + w_chan * w_bytes + 4          # fresh bytes / spatial elem
    if tile_s is None:
        # ~2 MiB of double-buffered input blocks per step, leaving headroom for
        # the f32 (C, ts) compute temporaries on every generation's scoped VMEM.
        tile_s = max(128, (2 * 1024 * 1024) // (2 * per_s))
    ts = _pick_tile_s(S, tile_s)
    num_tiles = S // ts
    grid = (N, num_tiles)

    cost = pl.CostEstimate(
        flops=8 * N * C * S,
        transcendentals=N * C * S,
        bytes_accessed=(x.size * x_bytes + t.size * 4 + w_in.size * w_bytes
                        + C * 4 + N * num_tiles * 4),
    )

    partials = pl.pallas_call(
        _pwce_kernel,
        out_shape=jax.ShapeDtypeStruct((N, num_tiles, 1), jnp.float32),
        grid=grid,
        in_specs=[
            pl.BlockSpec((1, C, ts), lambda n, s: (n, 0, s)),        # logits
            pl.BlockSpec((1, 1, ts), lambda n, s: (n, 0, s)),        # targets
            pl.BlockSpec((1, w_chan, ts), w_map),                    # pixel weights
            pl.BlockSpec((C, 1), lambda n, s: (0, 0)),               # class weights
        ],
        out_specs=pl.BlockSpec((1, 1, 1), lambda n, s: (n, s, 0)),   # per-tile partials
        compiler_params=pltpu.CompilerParams(
            dimension_semantics=("parallel", "parallel"),
            vmem_limit_bytes=32 * 1024 * 1024),
        cost_estimate=cost,
    )(x, t, w_in, cw)

    # Tiny final reduction + mean divide in the wrapper (keeps the grid parallel
    # and improves summation accuracy vs. a serial scalar accumulator).
    return jnp.sum(partials) / jnp.float32(N * C * S)


def _reference_loss(logits, target, weights, class_weights):
    """Pure-JAX reference mirroring the torch module line by line."""
    C = logits.shape[1]
    logp = jax.nn.log_softmax(logits.astype(jnp.float32), axis=1)
    onehot = jnp.moveaxis(jax.nn.one_hot(target, C, dtype=jnp.float32), -1, 1)
    w = jnp.broadcast_to(weights[None], logits.shape).astype(jnp.float32)
    cw = class_weights.reshape(1, C, 1, 1, 1).astype(jnp.float32)
    result = -(cw * w) * onehot * logp
    return jnp.mean(result)


if __name__ == "__main__":
    # Small, deterministic example.  N=1 so that weights.unsqueeze(0)
    # .expand_as(input) is valid, matching the original module's contract.
    N, C, D, H, W = 1, 4, 8, 16, 16

    key = jax.random.PRNGKey(0)
    k1, k2, k3 = jax.random.split(key, 3)
    logits = jax.random.normal(k1, (N, C, D, H, W), dtype=jnp.float32)
    target = jax.random.randint(k2, (N, D, H, W), 0, C, dtype=jnp.int32)
    weights = jax.random.uniform(k3, (N, D, H, W), dtype=jnp.float32,
                                 minval=0.1, maxval=2.0)
    class_weights = jnp.linspace(0.5, 2.0, C, dtype=jnp.float32)

    # TODO(synk): ignore_index masking path not implemented (module default is None).

    ref = _reference_loss(logits, target, weights, class_weights)

    # 1) auto-sized tile (single tile at this small size)
    loss = jax.block_until_ready(
        pixel_wise_cross_entropy_loss(logits, target, weights, class_weights))
    assert jnp.allclose(loss, ref, rtol=1e-5, atol=1e-6), (loss, ref)

    # 2) forced multi-tile grid (exercises per-tile partial sums)
    loss_mt = jax.block_until_ready(
        pixel_wise_cross_entropy_loss(logits, target, weights, class_weights,
                                      tile_s=512))
    assert jnp.allclose(loss_mt, ref, rtol=1e-5, atol=1e-6), (loss_mt, ref)

    # 3) bf16 logits stay bf16 on the wire; cast to f32 inside the kernel.
    logits_bf16 = logits.astype(jnp.bfloat16)
    ref_bf16 = _reference_loss(logits_bf16, target, weights, class_weights)
    loss_bf16 = jax.block_until_ready(
        pixel_wise_cross_entropy_loss(logits_bf16, target, weights, class_weights))
    assert jnp.allclose(loss_bf16, ref_bf16, rtol=1e-4, atol=1e-5), (loss_bf16, ref_bf16)

    # 4) torch N == C expand_as quirk (weight indexed by channel), no broadcast
    #    materialized on the kernel path.
    kq1, kq2, kq3 = jax.random.split(jax.random.PRNGKey(1), 3)
    logits_q = jax.random.normal(kq1, (C, C, D, H, W), dtype=jnp.float32)
    target_q = jax.random.randint(kq2, (C, D, H, W), 0, C, dtype=jnp.int32)
    weights_q = jax.random.uniform(kq3, (C, D, H, W), dtype=jnp.float32,
                                   minval=0.1, maxval=2.0)
    ref_q = _reference_loss(logits_q, target_q, weights_q, class_weights)
    loss_q = jax.block_until_ready(
        pixel_wise_cross_entropy_loss(logits_q, target_q, weights_q, class_weights))
    assert jnp.allclose(loss_q, ref_q, rtol=1e-5, atol=1e-6), (loss_q, ref_q)

    print("KERNEL_OK")
</pallas_src>

<mosaic_0001>
module attributes {stable_mosaic.version = 11 : i64} {
  func.func @_pwce_kernel(%arg0: i32, %arg1: i32, %arg2: memref<1x4x2048xf32, #tpu.memory_space<vmem>>, %arg3: memref<1x1x2048xi32, #tpu.memory_space<vmem>>, %arg4: memref<1x1x2048xf32, #tpu.memory_space<vmem>>, %arg5: memref<4x1xf32, #tpu.memory_space<vmem>>, %arg6: memref<1x1x1xf32, #tpu.memory_space<vmem>>) attributes {dimension_semantics = [#tpu.dimension_semantics<parallel>, #tpu.dimension_semantics<parallel>], iteration_bounds = array<i64: 1, 1>, scalar_prefetch = 0 : i64, scratch_operands = 0 : i64, tpu.core_type = #tpu.core_type<tc>, window_params = [{transform_indices = @transform_0, window_bounds = array<i64: 1, 4, 2048>}, {transform_indices = @transform_1, window_bounds = array<i64: 1, 1, 2048>}, {transform_indices = @transform_2, window_bounds = array<i64: 1, 1, 2048>}, {pipeline_mode = #tpu.pipeline_mode<synchronous>, transform_indices = @transform_3, window_bounds = array<i64: 4, 1>}, {transform_indices = @transform_4, window_bounds = array<i64: 1, 1, 1>}]} {
    %c0 = arith.constant 0 : index
    %c0_0 = arith.constant 0 : index
    %c0_1 = arith.constant 0 : index
    %0 = vector.load %arg2[%c0, %c0_0, %c0_1] : memref<1x4x2048xf32, #tpu.memory_space<vmem>>, vector<1x4x2048xf32>
    %1 = vector.shape_cast %0 : vector<1x4x2048xf32> to vector<4x2048xf32>
    %cst = arith.constant dense<0xFF800000> : vector<2048xf32>
    %2 = vector.multi_reduction <maximumf>, %1, %cst [0] : vector<4x2048xf32> to vector<2048xf32>
    %3 = vector.shape_cast %2 : vector<2048xf32> to vector<1x2048xf32>
    %4 = vector.broadcast %3 : vector<1x2048xf32> to vector<4x2048xf32>
    %5 = arith.subf %1, %4 : vector<4x2048xf32>
    %6 = math.exp %5 : vector<4x2048xf32>
    %cst_2 = arith.constant dense<0.000000e+00> : vector<2048xf32>
    %7 = vector.multi_reduction <add>, %6, %cst_2 [0] : vector<4x2048xf32> to vector<2048xf32>
    %8 = vector.shape_cast %7 : vector<2048xf32> to vector<1x2048xf32>
    %9 = math.log %8 : vector<1x2048xf32>
    %10 = vector.broadcast %9 : vector<1x2048xf32> to vector<4x2048xf32>
    %11 = arith.subf %5, %10 : vector<4x2048xf32>
    %c0_3 = arith.constant 0 : index
    %c0_4 = arith.constant 0 : index
    %c0_5 = arith.constant 0 : index
    %12 = vector.load %arg3[%c0_3, %c0_4, %c0_5] : memref<1x1x2048xi32, #tpu.memory_space<vmem>>, vector<1x1x2048xi32>
    %13 = vector.shape_cast %12 : vector<1x1x2048xi32> to vector<1x2048xi32>
    %14 = tpu.iota {dimensions = array<i32: 0>} : vector<4x2048xi32>
    %c0_6 = arith.constant 0 : index
    %c0_7 = arith.constant 0 : index
    %15 = vector.load %arg5[%c0_6, %c0_7] : memref<4x1xf32, #tpu.memory_space<vmem>>, vector<4x1xf32>
    %16 = vector.broadcast %13 : vector<1x2048xi32> to vector<4x2048xi32>
    %17 = arith.cmpi eq, %14, %16 : vector<4x2048xi32>
    %cst_8 = arith.constant 0.000000e+00 : f32
    %18 = vector.broadcast %cst_8 : f32 to vector<4x2048xf32>
    %19 = arith.select %17, %11, %18 : vector<4x2048xi1>, vector<4x2048xf32>
    %20 = vector.broadcast %15 : vector<4x1xf32> to vector<4x2048xf32>
    %21 = arith.mulf %19, %20 : vector<4x2048xf32>
    %c0_9 = arith.constant 0 : index
    %c0_10 = arith.constant 0 : index
    %c0_11 = arith.constant 0 : index
    %22 = vector.load %arg4[%c0_9, %c0_10, %c0_11] : memref<1x1x2048xf32, #tpu.memory_space<vmem>>, vector<1x1x2048xf32>
    %23 = vector.shape_cast %22 : vector<1x1x2048xf32> to vector<1x2048xf32>
    %cst_12 = arith.constant dense<0.000000e+00> : vector<2048xf32>
    %24 = vector.multi_reduction <add>, %21, %cst_12 [0] : vector<4x2048xf32> to vector<2048xf32>
    %25 = vector.shape_cast %24 : vector<2048xf32> to vector<1x2048xf32>
    %26 = arith.mulf %25, %23 : vector<1x2048xf32>
    %cst_13 = arith.constant dense<0.000000e+00> : vector<1xf32>
    %27 = vector.multi_reduction <add>, %26, %cst_13 [1] : vector<1x2048xf32> to vector<1xf32>
    %28 = vector.shape_cast %27 : vector<1xf32> to vector<1x1xf32>
    %cst_14 = arith.constant 0.000000e+00 : f32
    %29 = vector.broadcast %cst_14 : f32 to vector<1x1xf32>
    %30 = arith.subf %29, %28 : vector<1x1xf32>
    %c0_15 = arith.constant 0 : index
    %c0_16 = arith.constant 0 : index
    %c0_17 = arith.constant 0 : index
    %31 = vector.load %arg6[%c0_15, %c0_16, %c0_17] : memref<1x1x1xf32, #tpu.memory_space<vmem>>, vector<1x1x1xf32>
    %32 = vector.shape_cast %31 : vector<1x1x1xf32> to vector<1x1xf32>
    %33 = vector.shape_cast %30 : vector<1x1xf32> to vector<1x1x1xf32>
    tpu.vector_store %arg6[%c0_15, %c0_16, %c0_17], %33 {strides = array<i32>} : memref<1x1x1xf32, #tpu.memory_space<vmem>>, vector<1x1x1xf32>,
    return
  }
  func.func @transform_0(%arg0: i32, %arg1: i32) -> (i32, i32, i32) {
    %c0_i32 = arith.constant 0 : i32
    %c0_i32_0 = arith.constant 0 : i32
    return %arg0, %c0_i32, %arg1 : i32, i32, i32
  }
  func.func @transform_1(%arg0: i32, %arg1: i32) -> (i32, i32, i32) {
    %c0_i32 = arith.constant 0 : i32
    %c0_i32_0 = arith.constant 0 : i32
    return %arg0, %c0_i32, %arg1 : i32, i32, i32
  }
  func.func @transform_2(%arg0: i32, %arg1: i32) -> (i32, i32, i32) {
    %c0_i32 = arith.constant 0 : i32
    %c0_i32_0 = arith.constant 0 : i32
    return %arg0, %c0_i32, %arg1 : i32, i32, i32
  }
  func.func @transform_3(%arg0: i32, %arg1: i32) -> (i32, i32) {
    %c0_i32 = arith.constant 0 : i32
    %c0_i32_0 = arith.constant 0 : i32
    %c0_i32_1 = arith.constant 0 : i32
    return %c0_i32, %c0_i32_0 : i32, i32
  }
  func.func @transform_4(%arg0: i32, %arg1: i32) -> (i32, i32, i32) {
    %c0_i32 = arith.constant 0 : i32
    %c0_i32_0 = arith.constant 0 : i32
    return %arg0, %arg1, %c0_i32 : i32, i32, i32
  }
}

</mosaic_0001>

<llo_original>
// kernel: tpu_custom_call.1
$region0: #{tpu_custom_call.1}
  #allocation0 [shape = 'u32[]', space=smem, size = 0x4, offset = 0x4, fixed_abs, tag = 'smem constant byte address 0x4 - core index']
  #allocation1 [shape = 'u32[144,128]{1,0:T(1,128)}', space=vmem, size = 0x12000, scoped, tag = 'internal scratch']
  %s0 = inlined_call_operand.hbm [shape: f32[1,4,2048], index: 0, kind: input, shape index: {}]
  %s1 = inlined_call_operand.hbm [shape: s32[1,1,2048], index: 1, kind: input, shape index: {}]
  %s2 = inlined_call_operand.hbm [shape: f32[1,1,2048], index: 2, kind: input, shape index: {}]
  %s3 = inlined_call_operand.vmem [shape: f32[4,1], index: 3, kind: input, shape index: {}]
  %s4 = inlined_call_operand.hbm [shape: f32[1,1,1], index: 4, kind: output, shape index: {}]
  %s5 = sld [smem:[#allocation0]]
  $region38: #{tpu_custom_call.1} parent=0
    _
  %s7 = ssub.s32 1, %s5
  %s8 = scalar_select 0, %s7, %s5
  $region1: #{tpu_custom_call.1} parent=0
    #allocation2 [shape = 'u8[32768]{0}', space=vmem, size = 0x8000, scoped, tag = 'input window, operand 0, single buffered']
    #allocation3 [shape = 's32[1]{0}', space=sflag, size = 0x4, scoped, tag = 'scoped memory for tpu_custom_call.1']
    #allocation4 [shape = 's32[1]{0}', space=sflag, size = 0x4, scoped, tag = 'scoped memory for tpu_custom_call.1']
    #allocation5 [shape = 'u8[8192]{0}', space=vmem, size = 0x2000, scoped, tag = 'input window, operand 1, single buffered']
    #allocation6 [shape = 's32[1]{0}', space=sflag, size = 0x4, scoped, tag = 'scoped memory for tpu_custom_call.1']
    #allocation7 [shape = 'u8[8192]{0}', space=vmem, size = 0x2000, scoped, tag = 'input window, operand 2, single buffered']
    #allocation8 [shape = 'u8[512]{0}', space=vmem, size = 0x400, scoped, tag = 'output window, operand 0, single buffered']
    %9 = vsyncpa [#allocation3], 0
    %10 = vsyncpa [#allocation6], 0
    %11 = vsyncpa [#allocation4], 0
    // Predicated region
    $region2: #{tpu_custom_call.1} parent=1 // pred_check
      _
    $region3: #{tpu_custom_call.1} parent=1 // pred_check_branch
      %13 = sbr.rel (0) target = $region5
    $region4: #{tpu_custom_call.1} parent=1 // pred_region
      %s15 = ssub.s32 1024, 1024
      %16 = vsyncadd [#allocation3], %s15
      %s18 = sshll.u32 [#allocation2], 4
      %s19 = int_to_ptr.vmem [resolvable:$true] %s18
      %21 = dma.hbm_to_vmem [thread:$0]  %s0, 1024, %s19, [#allocation3]
    $region5: #{tpu_custom_call.1} parent=1 // pred_fallthru
      _
    // Predicated region
    $region6: #{tpu_custom_call.1} parent=1 // pred_check
      _
    $region7: #{tpu_custom_call.1} parent=1 // pred_check_branch
      %23 = sbr.rel (0) target = $region9
    $region8: #{tpu_custom_call.1} parent=1 // pred_region
      %s25 = ssub.s32 256, 256
      %26 = vsyncadd [#allocation6], %s25
      %s28 = sshll.u32 [#allocation5], 4
      %s29 = int_to_ptr.vmem [resolvable:$true] %s28
      %31 = dma.hbm_to_vmem [thread:$0]  %s1, 256, %s29, [#allocation6]
    $region9: #{tpu_custom_call.1} parent=1 // pred_fallthru
      _
    // Predicated region
    $region10: #{tpu_custom_call.1} parent=1 // pred_check
      _
    $region11: #{tpu_custom_call.1} parent=1 // pred_check_branch
      %33 = sbr.rel (0) target = $region13
    $region12: #{tpu_custom_call.1} parent=1 // pred_region
      %s35 = ssub.s32 256, 256
      %36 = vsyncadd [#allocation6], %s35
      %s38 = sshll.u32 [#allocation7], 4
      %s39 = int_to_ptr.vmem [resolvable:$true] %s38
      %41 = dma.hbm_to_vmem [thread:$0]  %s2, 256, %s39, [#allocation6]
    $region13: #{tpu_custom_call.1} parent=1 // pred_fallthru
      _
    // Predicated region
    $region14: #{tpu_custom_call.1} parent=1 // pred_check
      _
    $region15: #{tpu_custom_call.1} parent=1 // pred_check_branch
      %43 = sbr.rel (0) target = $region17
    $region16: #{tpu_custom_call.1} parent=1 // pred_region
      _
    $region17: #{tpu_custom_call.1} parent=1 // pred_fallthru
      _
    // Predicated region
    $region18: #{tpu_custom_call.1} parent=1 // pred_check
      _
    $region19: #{tpu_custom_call.1} parent=1 // pred_check_branch
      %45 = sbr.rel (0) target = $region21
    $region20: #{tpu_custom_call.1} parent=1 // pred_region
      %46 = dma.done [#allocation3], 1024
    $region21: #{tpu_custom_call.1} parent=1 // pred_fallthru
      _
    // Predicated region
    $region22: #{tpu_custom_call.1} parent=1 // pred_check
      _
    $region23: #{tpu_custom_call.1} parent=1 // pred_check_branch
      %48 = sbr.rel (0) target = $region25
    $region24: #{tpu_custom_call.1} parent=1 // pred_region
      %49 = dma.done [#allocation6], 256
    $region25: #{tpu_custom_call.1} parent=1 // pred_fallthru
      _
    // Predicated region
    $region26: #{tpu_custom_call.1} parent=1 // pred_check
      _
    $region27: #{tpu_custom_call.1} parent=1 // pred_check_branch
      %51 = sbr.rel (0) target = $region29
    $region28: #{tpu_custom_call.1} parent=1 // pred_region
      %52 = dma.done [#allocation6], 256
    $region29: #{tpu_custom_call.1} parent=1 // pred_fallthru
      _
    %v53 = vld [vmem:[#allocation2] sm:$0xff]
    %v54 = vld [vmem:[#allocation2 + $0x8] sm:$0xff]
    %v55 = vld [vmem:[#allocation2 + $0x10] sm:$0xff]
    %v56 = vld [vmem:[#allocation2 + $0x18] sm:$0xff]
    %v57 = vld [vmem:[#allocation2 + $0x20] sm:$0xff]
    %v58 = vld [vmem:[#allocation2 + $0x28] sm:$0xff]
    %v59 = vld [vmem:[#allocation2 + $0x30] sm:$0xff]
    %v60 = vld [vmem:[#allocation2 + $0x38] sm:$0xff]
    %v69 = vcombine.high %v53, %v53
    %v70 = vcombine.high %v54, %v54
    %v71 = vcombine.high %v55, %v55
    %v72 = vcombine.high %v56, %v56
    %v73 = vcombine.high %v57, %v57
    %v74 = vcombine.high %v58, %v58
    %v75 = vcombine.high %v59, %v59
    %v76 = vcombine.high %v60, %v60
    %vm85 = vcmask 1043456
    %v86 = vsel %vm85, %v53, -inf
    %v87 = vrot.slane %v86, 4
    %v88 = vmax.f32 %v86, %v87
    %v89 = vrot.slane %v88, 2
    %v90 = vmax.f32 %v88, %v89
    %v91 = vrot.slane %v90, 1
    %v92 = vmax.f32 %v90, %v91
    %v93 = vsel %vm85, %v69, -inf
    %v94 = vrot.slane %v93, 4
    %v95 = vmax.f32 %v93, %v94
    %v96 = vrot.slane %v95, 2
    %v97 = vmax.f32 %v95, %v96
    %v98 = vrot.slane %v97, 1
    %v99 = vmax.f32 %v97, %v98
    %v100 = vsel %vm85, %v54, -inf
    %v101 = vrot.slane %v100, 4
    %v102 = vmax.f32 %v100, %v101
    %v103 = vrot.slane %v102, 2
    %v104 = vmax.f32 %v102, %v103
    %v105 = vrot.slane %v104, 1
    %v106 = vmax.f32 %v104, %v105
    %v107 = vsel %vm85, %v70, -inf
    %v108 = vrot.slane %v107, 4
    %v109 = vmax.f32 %v107, %v108
    %v110 = vrot.slane %v109, 2
    %v111 = vmax.f32 %v109, %v110
    %v112 = vrot.slane %v111, 1
    %v113 = vmax.f32 %v111, %v112
    %v114 = vsel %vm85, %v55, -inf
    %v115 = vrot.slane %v114, 4
    %v116 = vmax.f32 %v114, %v115
    %v117 = vrot.slane %v116, 2
    %v118 = vmax.f32 %v116, %v117
    %v119 = vrot.slane %v118, 1
    %v120 = vmax.f32 %v118, %v119
    %v121 = vsel %vm85, %v71, -inf
    %v122 = vrot.slane %v121, 4
    %v123 = vmax.f32 %v121, %v122
    %v124 = vrot.slane %v123, 2
    %v125 = vmax.f32 %v123, %v124
    %v126 = vrot.slane %v125, 1
    %v127 = vmax.f32 %v125, %v126
    %v128 = vsel %vm85, %v56, -inf
    %v129 = vrot.slane %v128, 4
    %v130 = vmax.f32 %v128, %v129
    %v131 = vrot.slane %v130, 2
    %v132 = vmax.f32 %v130, %v131
    %v133 = vrot.slane %v132, 1
    %v134 = vmax.f32 %v132, %v133
    %v135 = vsel %vm85, %v72, -inf
    %v136 = vrot.slane %v135, 4
    %v137 = vmax.f32 %v135, %v136
    %v138 = vrot.slane %v137, 2
    %v139 = vmax.f32 %v137, %v138
    %v140 = vrot.slane %v139, 1
    %v141 = vmax.f32 %v139, %v140
    %v142 = vsel %vm85, %v57, -inf
    %v143 = vrot.slane %v142, 4
    %v144 = vmax.f32 %v142, %v143
    %v145 = vrot.slane %v144, 2
    %v146 = vmax.f32 %v144, %v145
    %v147 = vrot.slane %v146, 1
    %v148 = vmax.f32 %v146, %v147
    %v149 = vsel %vm85, %v73, -inf
    %v150 = vrot.slane %v149, 4
    %v151 = vmax.f32 %v149, %v150
    %v152 = vrot.slane %v151, 2
    %v153 = vmax.f32 %v151, %v152
    %v154 = vrot.slane %v153, 1
    %v155 = vmax.f32 %v153, %v154
    %v156 = vsel %vm85, %v58, -inf
    %v157 = vrot.slane %v156, 4
    %v158 = vmax.f32 %v156, %v157
    %v159 = vrot.slane %v158, 2
    %v160 = vmax.f32 %v158, %v159
    %v161 = vrot.slane %v160, 1
    %v162 = vmax.f32 %v160, %v161
    %v163 = vsel %vm85, %v74, -inf
    %v164 = vrot.slane %v163, 4
    %v165 = vmax.f32 %v163, %v164
    %v166 = vrot.slane %v165, 2
    %v167 = vmax.f32 %v165, %v166
    %v168 = vrot.slane %v167, 1
    %v169 = vmax.f32 %v167, %v168
    %v170 = vsel %vm85, %v59, -inf
    %v171 = vrot.slane %v170, 4
    %v172 = vmax.f32 %v170, %v171
    %v173 = vrot.slane %v172, 2
    %v174 = vmax.f32 %v172, %v173
    %v175 = vrot.slane %v174, 1
    %v176 = vmax.f32 %v174, %v175
    %v177 = vsel %vm85, %v75, -inf
    %v178 = vrot.slane %v177, 4
    %v179 = vmax.f32 %v177, %v178
    %v180 = vrot.slane %v179, 2
    %v181 = vmax.f32 %v179, %v180
    %v182 = vrot.slane %v181, 1
    %v183 = vmax.f32 %v181, %v182
    %v184 = vsel %vm85, %v60, -inf
    %v185 = vrot.slane %v184, 4
    %v186 = vmax.f32 %v184, %v185
    %v187 = vrot.slane %v186, 2
    %v188 = vmax.f32 %v186, %v187
    %v189 = vrot.slane %v188, 1
    %v190 = vmax.f32 %v188, %v189
    %v191 = vsel %vm85, %v76, -inf
    %v192 = vrot.slane %v191, 4
    %v193 = vmax.f32 %v191, %v192
    %v194 = vrot.slane %v193, 2
    %v195 = vmax.f32 %v193, %v194
    %v196 = vrot.slane %v195, 1
    %v197 = vmax.f32 %v195, %v196
    %v214 = vcombine.low %v92, %v99
    %v215 = vcombine.low %v106, %v113
    %v216 = vcombine.low %v120, %v127
    %v217 = vcombine.low %v134, %v141
    %v218 = vcombine.low %v148, %v155
    %v219 = vcombine.low %v162, %v169
    %v220 = vcombine.low %v176, %v183
    %v221 = vcombine.low %v190, %v197
    %v230 = vsub.f32 %v53, %v214
    %v231 = vsub.f32 %v54, %v215
    %v232 = vsub.f32 %v55, %v216
    %v233 = vsub.f32 %v56, %v217
    %v234 = vsub.f32 %v57, %v218
    %v235 = vsub.f32 %v58, %v219
    %v236 = vsub.f32 %v59, %v220
    %v237 = vsub.f32 %v60, %v221
    %v238 = vmul.f32 %v230, 1.442695
    %v239 = vpow.pop %v238
    %v240 = vmul.f32 %v231, 1.442695
    %v241 = vpow.pop %v240
    %v242 = vmul.f32 %v232, 1.442695
    %v243 = vpow.pop %v242
    %v244 = vmul.f32 %v233, 1.442695
    %v245 = vpow.pop %v244
    %v246 = vmul.f32 %v234, 1.442695
    %v247 = vpow.pop %v246
    %v248 = vmul.f32 %v235, 1.442695
    %v249 = vpow.pop %v248
    %v250 = vmul.f32 %v236, 1.442695
    %v251 = vpow.pop %v250
    %v252 = vmul.f32 %v237, 1.442695
    %v253 = vpow.pop %v252
    %v262 = vcombine.high %v239, %v239
    %v263 = vcombine.high %v241, %v241
    %v264 = vcombine.high %v243, %v243
    %v265 = vcombine.high %v245, %v245
    %v266 = vcombine.high %v247, %v247
    %v267 = vcombine.high %v249, %v249
    %v268 = vcombine.high %v251, %v251
    %v269 = vcombine.high %v253, %v253
    %v278 = vsel %vm85, %v239, 0.0
    %v279 = vrot.slane %v278, 4
    %v280 = vadd.f32 %v278, %v279
    %v281 = vrot.slane %v280, 2
    %v282 = vadd.f32 %v280, %v281
    %v283 = vrot.slane %v282, 1
    %v284 = vadd.f32 %v282, %v283
    %v285 = vsel %vm85, %v262, 0.0
    %v286 = vrot.slane %v285, 4
    %v287 = vadd.f32 %v285, %v286
    %v288 = vrot.slane %v287, 2
    %v289 = vadd.f32 %v287, %v288
    %v290 = vrot.slane %v289, 1
    %v291 = vadd.f32 %v289, %v290
    %v292 = vsel %vm85, %v241, 0.0
    %v293 = vrot.slane %v292, 4
    %v294 = vadd.f32 %v292, %v293
    %v295 = vrot.slane %v294, 2
    %v296 = vadd.f32 %v294, %v295
    %v297 = vrot.slane %v296, 1
    %v298 = vadd.f32 %v296, %v297
    %v299 = vsel %vm85, %v263, 0.0
    %v300 = vrot.slane %v299, 4
    %v301 = vadd.f32 %v299, %v300
    %v302 = vrot.slane %v301, 2
    %v303 = vadd.f32 %v301, %v302
    %v304 = vrot.slane %v303, 1
    %v305 = vadd.f32 %v303, %v304
    %v306 = vsel %vm85, %v243, 0.0
    %v307 = vrot.slane %v306, 4
    %v308 = vadd.f32 %v306, %v307
    %v309 = vrot.slane %v308, 2
    %v310 = vadd.f32 %v308, %v309
    %v311 = vrot.slane %v310, 1
    %v312 = vadd.f32 %v310, %v311
    %v313 = vsel %vm85, %v264, 0.0
    %v314 = vrot.slane %v313, 4
    %v315 = vadd.f32 %v313, %v314
    %v316 = vrot.slane %v315, 2
    %v317 = vadd.f32 %v315, %v316
    %v318 = vrot.slane %v317, 1
    %v319 = vadd.f32 %v317, %v318
    %v320 = vsel %vm85, %v245, 0.0
    %v321 = vrot.slane %v320, 4
    %v322 = vadd.f32 %v320, %v321
    %v323 = vrot.slane %v322, 2
    %v324 = vadd.f32 %v322, %v323
    %v325 = vrot.slane %v324, 1
    %v326 = vadd.f32 %v324, %v325
    %v327 = vsel %vm85, %v265, 0.0
    %v328 = vrot.slane %v327, 4
    %v329 = vadd.f32 %v327, %v328
    %v330 = vrot.slane %v329, 2
    %v331 = vadd.f32 %v329, %v330
    %v332 = vrot.slane %v331, 1
    %v333 = vadd.f32 %v331, %v332
    %v334 = vsel %vm85, %v247, 0.0
    %v335 = vrot.slane %v334, 4
    %v336 = vadd.f32 %v334, %v335
    %v337 = vrot.slane %v336, 2
    %v338 = vadd.f32 %v336, %v337
    %v339 = vrot.slane %v338, 1
    %v340 = vadd.f32 %v338, %v339
    %v341 = vsel %vm85, %v266, 0.0
    %v342 = vrot.slane %v341, 4
    %v343 = vadd.f32 %v341, %v342
    %v344 = vrot.slane %v343, 2
    %v345 = vadd.f32 %v343, %v344
    %v346 = vrot.slane %v345, 1
    %v347 = vadd.f32 %v345, %v346
    %v348 = vsel %vm85, %v249, 0.0
    %v349 = vrot.slane %v348, 4
    %v350 = vadd.f32 %v348, %v349
    %v351 = vrot.slane %v350, 2
    %v352 = vadd.f32 %v350, %v351
    %v353 = vrot.slane %v352, 1
    %v354 = vadd.f32 %v352, %v353
    %v355 = vsel %vm85, %v267, 0.0
    %v356 = vrot.slane %v355, 4
    %v357 = vadd.f32 %v355, %v356
    %v358 = vrot.slane %v357, 2
    %v359 = vadd.f32 %v357, %v358
    %v360 = vrot.slane %v359, 1
    %v361 = vadd.f32 %v359, %v360
    %v362 = vsel %vm85, %v251, 0.0
    %v363 = vrot.slane %v362, 4
    %v364 = vadd.f32 %v362, %v363
    %v365 = vrot.slane %v364, 2
    %v366 = vadd.f32 %v364, %v365
    %v367 = vrot.slane %v366, 1
    %v368 = vadd.f32 %v366, %v367
    %v369 = vsel %vm85, %v268, 0.0
    %v370 = vrot.slane %v369, 4
    %v371 = vadd.f32 %v369, %v370
    %v372 = vrot.slane %v371, 2
    %v373 = vadd.f32 %v371, %v372
    %v374 = vrot.slane %v373, 1
    %v375 = vadd.f32 %v373, %v374
    %v376 = vsel %vm85, %v253, 0.0
    %v377 = vrot.slane %v376, 4
    %v378 = vadd.f32 %v376, %v377
    %v379 = vrot.slane %v378, 2
    %v380 = vadd.f32 %v378, %v379
    %v381 = vrot.slane %v380, 1
    %v382 = vadd.f32 %v380, %v381
    %v383 = vsel %vm85, %v269, 0.0
    %v384 = vrot.slane %v383, 4
    %v385 = vadd.f32 %v383, %v384
    %v386 = vrot.slane %v385, 2
    %v387 = vadd.f32 %v385, %v386
    %v388 = vrot.slane %v387, 1
    %v389 = vadd.f32 %v387, %v388
    %v390 = vlog2.pop %v284
    %v391 = vmul.f32 %v390, 0.6931472
    %v392 = vlog2.pop %v291
    %v393 = vmul.f32 %v392, 0.6931472
    %v394 = vlog2.pop %v298
    %v395 = vmul.f32 %v394, 0.6931472
    %v396 = vlog2.pop %v305
    %v397 = vmul.f32 %v396, 0.6931472
    %v398 = vlog2.pop %v312
    %v399 = vmul.f32 %v398, 0.6931472
    %v400 = vlog2.pop %v319
    %v401 = vmul.f32 %v400, 0.6931472
    %v402 = vlog2.pop %v326
    %v403 = vmul.f32 %v402, 0.6931472
    %v404 = vlog2.pop %v333
    %v405 = vmul.f32 %v404, 0.6931472
    %v406 = vlog2.pop %v340
    %v407 = vmul.f32 %v406, 0.6931472
    %v408 = vlog2.pop %v347
    %v409 = vmul.f32 %v408, 0.6931472
    %v410 = vlog2.pop %v354
    %v411 = vmul.f32 %v410, 0.6931472
    %v412 = vlog2.pop %v361
    %v413 = vmul.f32 %v412, 0.6931472
    %v414 = vlog2.pop %v368
    %v415 = vmul.f32 %v414, 0.6931472
    %v416 = vlog2.pop %v375
    %v417 = vmul.f32 %v416, 0.6931472
    %v418 = vlog2.pop %v382
    %v419 = vmul.f32 %v418, 0.6931472
    %v420 = vlog2.pop %v389
    %v421 = vmul.f32 %v420, 0.6931472
    %v438 = vcombine.low %v391, %v393
    %v439 = vcombine.low %v395, %v397
    %v440 = vcombine.low %v399, %v401
    %v441 = vcombine.low %v403, %v405
    %v442 = vcombine.low %v407, %v409
    %v443 = vcombine.low %v411, %v413
    %v444 = vcombine.low %v415, %v417
    %v445 = vcombine.low %v419, %v421
    %v454 = vsub.f32 %v230, %v438
    %v455 = vsub.f32 %v231, %v439
    %v456 = vsub.f32 %v232, %v440
    %v457 = vsub.f32 %v233, %v441
    %v458 = vsub.f32 %v234, %v442
    %v459 = vsub.f32 %v235, %v443
    %v460 = vsub.f32 %v236, %v444
    %v461 = vsub.f32 %v237, %v445
    %v462 = vld [vmem:[#allocation5] sm:$0xff]
    %v463 = vld [vmem:[#allocation5 + $0x8] sm:$0xff]
    %v464 = vlaneseq
    %v465 = vshrl.u32 %v464, 7
    %v466 = vld [vmem:[%s3] sm:$0xf]
    %v467 = vlaneseq
    %v468 = vshrl.u32 %v467, 7
    %v469 = vsub.s32 0, %v468
    %v470 = vrot.slane %v462, %v469
    %v471 = vlaneseq
    %v472 = vshrl.u32 %v471, 7
    %v473 = vsub.s32 1, %v472
    %v474 = vrot.slane %v462, %v473
    %v475 = vlaneseq
    %v476 = vshrl.u32 %v475, 7
    %v477 = vsub.s32 2, %v476
    %v478 = vrot.slane %v462, %v477
    %v479 = vlaneseq
    %v480 = vshrl.u32 %v479, 7
    %v481 = vsub.s32 3, %v480
    %v482 = vrot.slane %v462, %v481
    %v483 = vlaneseq
    %v484 = vshrl.u32 %v483, 7
    %v485 = vsub.s32 4, %v484
    %v486 = vrot.slane %v462, %v485
    %v487 = vlaneseq
    %v488 = vshrl.u32 %v487, 7
    %v489 = vsub.s32 5, %v488
    %v490 = vrot.slane %v462, %v489
    %v491 = vlaneseq
    %v492 = vshrl.u32 %v491, 7
    %v493 = vsub.s32 6, %v492
    %v494 = vrot.slane %v462, %v493
    %v495 = vlaneseq
    %v496 = vshrl.u32 %v495, 7
    %v497 = vsub.s32 7, %v496
    %v498 = vrot.slane %v462, %v497
    %v499 = vlaneseq
    %v500 = vshrl.u32 %v499, 7
    %v501 = vsub.s32 0, %v500
    %v502 = vrot.slane %v463, %v501
    %v503 = vlaneseq
    %v504 = vshrl.u32 %v503, 7
    %v505 = vsub.s32 1, %v504
    %v506 = vrot.slane %v463, %v505
    %v507 = vlaneseq
    %v508 = vshrl.u32 %v507, 7
    %v509 = vsub.s32 2, %v508
    %v510 = vrot.slane %v463, %v509
    %v511 = vlaneseq
    %v512 = vshrl.u32 %v511, 7
    %v513 = vsub.s32 3, %v512
    %v514 = vrot.slane %v463, %v513
    %v515 = vlaneseq
    %v516 = vshrl.u32 %v515, 7
    %v517 = vsub.s32 4, %v516
    %v518 = vrot.slane %v463, %v517
    %v519 = vlaneseq
    %v520 = vshrl.u32 %v519, 7
    %v521 = vsub.s32 5, %v520
    %v522 = vrot.slane %v463, %v521
    %v523 = vlaneseq
    %v524 = vshrl.u32 %v523, 7
    %v525 = vsub.s32 6, %v524
    %v526 = vrot.slane %v463, %v525
    %v527 = vlaneseq
    %v528 = vshrl.u32 %v527, 7
    %v529 = vsub.s32 7, %v528
    %v530 = vrot.slane %v463, %v529
    %vm531 = vcmp.eq.s32.totalorder %v465, %v470
    %vm532 = vcmp.eq.s32.totalorder %v465, %v474
    %vm533 = vcmp.eq.s32.totalorder %v465, %v478
    %vm534 = vcmp.eq.s32.totalorder %v465, %v482
    %vm535 = vcmp.eq.s32.totalorder %v465, %v486
    %vm536 = vcmp.eq.s32.totalorder %v465, %v490
    %vm537 = vcmp.eq.s32.totalorder %v465, %v494
    %vm538 = vcmp.eq.s32.totalorder %v465, %v498
    %vm539 = vcmp.eq.s32.totalorder %v465, %v502
    %vm540 = vcmp.eq.s32.totalorder %v465, %v506
    %vm541 = vcmp.eq.s32.totalorder %v465, %v510
    %vm542 = vcmp.eq.s32.totalorder %v465, %v514
    %vm543 = vcmp.eq.s32.totalorder %v465, %v518
    %vm544 = vcmp.eq.s32.totalorder %v465, %v522
    %vm545 = vcmp.eq.s32.totalorder %v465, %v526
    %vm546 = vcmp.eq.s32.totalorder %v465, %v530
    %v555 = vcombine.high %v454, %v454
    %v556 = vcombine.high %v455, %v455
    %v557 = vcombine.high %v456, %v456
    %v558 = vcombine.high %v457, %v457
    %v559 = vcombine.high %v458, %v458
    %v560 = vcombine.high %v459, %v459
    %v561 = vcombine.high %v460, %v460
    %v562 = vcombine.high %v461, %v461
    %v571 = vsel %vm531, %v454, 0.0
    %v572 = vsel %vm532, %v555, 0.0
    %v573 = vsel %vm533, %v455, 0.0
    %v574 = vsel %vm534, %v556, 0.0
    %v575 = vsel %vm535, %v456, 0.0
    %v576 = vsel %vm536, %v557, 0.0
    %v577 = vsel %vm537, %v457, 0.0
    %v578 = vsel %vm538, %v558, 0.0
    %v579 = vsel %vm539, %v458, 0.0
    %v580 = vsel %vm540, %v559, 0.0
    %v581 = vsel %vm541, %v459, 0.0
    %v582 = vsel %vm542, %v560, 0.0
    %v583 = vsel %vm543, %v460, 0.0
    %v584 = vsel %vm544, %v561, 0.0
    %v585 = vsel %vm545, %v461, 0.0
    %v586 = vsel %vm546, %v562, 0.0
    %588 = vset.pattern.permute.xlu0 0
    %589 = vperm.xlu0 %588, %v466
    %v590 = vpop.permute.xlu0 %589
    %v592 = vmul.f32 %v571, %v590
    %v593 = vmul.f32 %v572, %v590
    %v594 = vmul.f32 %v573, %v590
    %v595 = vmul.f32 %v574, %v590
    %v596 = vmul.f32 %v575, %v590
    %v597 = vmul.f32 %v576, %v590
    %v598 = vmul.f32 %v577, %v590
    %v599 = vmul.f32 %v578, %v590
    %v600 = vmul.f32 %v579, %v590
    %v601 = vmul.f32 %v580, %v590
    %v602 = vmul.f32 %v581, %v590
    %v603 = vmul.f32 %v582, %v590
    %v604 = vmul.f32 %v583, %v590
    %v605 = vmul.f32 %v584, %v590
    %v606 = vmul.f32 %v585, %v590
    %v607 = vmul.f32 %v586, %v590
    %v608 = vld [vmem:[#allocation7] sm:$0xff]
    %v609 = vld [vmem:[#allocation7 + $0x8] sm:$0xff]
    %v610 = vsel %vm85, %v592, 0.0
    %v611 = vrot.slane %v610, 4
    %v612 = vadd.f32 %v610, %v611
    %v613 = vrot.slane %v612, 2
    %v614 = vadd.f32 %v612, %v613
    %v615 = vrot.slane %v614, 1
    %v616 = vadd.f32 %v614, %v615
    %v617 = vsel %vm85, %v593, 0.0
    %v618 = vrot.slane %v617, 4
    %v619 = vadd.f32 %v617, %v618
    %v620 = vrot.slane %v619, 2
    %v621 = vadd.f32 %v619, %v620
    %v622 = vrot.slane %v621, 1
    %v623 = vadd.f32 %v621, %v622
    %v624 = vsel %vm85, %v594, 0.0
    %v625 = vrot.slane %v624, 4
    %v626 = vadd.f32 %v624, %v625
    %v627 = vrot.slane %v626, 2
    %v628 = vadd.f32 %v626, %v627
    %v629 = vrot.slane %v628, 1
    %v630 = vadd.f32 %v628, %v629
    %v631 = vsel %vm85, %v595, 0.0
    %v632 = vrot.slane %v631, 4
    %v633 = vadd.f32 %v631, %v632
    %v634 = vrot.slane %v633, 2
    %v635 = vadd.f32 %v633, %v634
    %v636 = vrot.slane %v635, 1
    %v637 = vadd.f32 %v635, %v636
    %v638 = vsel %vm85, %v596, 0.0
    %v639 = vrot.slane %v638, 4
    %v640 = vadd.f32 %v638, %v639
    %v641 = vrot.slane %v640, 2
    %v642 = vadd.f32 %v640, %v641
    %v643 = vrot.slane %v642, 1
    %v644 = vadd.f32 %v642, %v643
    %v645 = vsel %vm85, %v597, 0.0
    %v646 = vrot.slane %v645, 4
    %v647 = vadd.f32 %v645, %v646
    %v648 = vrot.slane %v647, 2
    %v649 = vadd.f32 %v647, %v648
    %v650 = vrot.slane %v649, 1
    %v651 = vadd.f32 %v649, %v650
    %v652 = vsel %vm85, %v598, 0.0
    %v653 = vrot.slane %v652, 4
    %v654 = vadd.f32 %v652, %v653
    %v655 = vrot.slane %v654, 2
    %v656 = vadd.f32 %v654, %v655
    %v657 = vrot.slane %v656, 1
    %v658 = vadd.f32 %v656, %v657
    %v659 = vsel %vm85, %v599, 0.0
    %v660 = vrot.slane %v659, 4
    %v661 = vadd.f32 %v659, %v660
    %v662 = vrot.slane %v661, 2
    %v663 = vadd.f32 %v661, %v662
    %v664 = vrot.slane %v663, 1
    %v665 = vadd.f32 %v663, %v664
    %v666 = vsel %vm85, %v600, 0.0
    %v667 = vrot.slane %v666, 4
    %v668 = vadd.f32 %v666, %v667
    %v669 = vrot.slane %v668, 2
    %v670 = vadd.f32 %v668, %v669
    %v671 = vrot.slane %v670, 1
    %v672 = vadd.f32 %v670, %v671
    %v673 = vsel %vm85, %v601, 0.0
    %v674 = vrot.slane %v673, 4
    %v675 = vadd.f32 %v673, %v674
    %v676 = vrot.slane %v675, 2
    %v677 = vadd.f32 %v675, %v676
    %v678 = vrot.slane %v677, 1
    %v679 = vadd.f32 %v677, %v678
    %v680 = vsel %vm85, %v602, 0.0
    %v681 = vrot.slane %v680, 4
    %v682 = vadd.f32 %v680, %v681
    %v683 = vrot.slane %v682, 2
    %v684 = vadd.f32 %v682, %v683
    %v685 = vrot.slane %v684, 1
    %v686 = vadd.f32 %v684, %v685
    %v687 = vsel %vm85, %v603, 0.0
    %v688 = vrot.slane %v687, 4
    %v689 = vadd.f32 %v687, %v688
    %v690 = vrot.slane %v689, 2
    %v691 = vadd.f32 %v689, %v690
    %v692 = vrot.slane %v691, 1
    %v693 = vadd.f32 %v691, %v692
    %v694 = vsel %vm85, %v604, 0.0
    %v695 = vrot.slane %v694, 4
    %v696 = vadd.f32 %v694, %v695
    %v697 = vrot.slane %v696, 2
    %v698 = vadd.f32 %v696, %v697
    %v699 = vrot.slane %v698, 1
    %v700 = vadd.f32 %v698, %v699
    %v701 = vsel %vm85, %v605, 0.0
    %v702 = vrot.slane %v701, 4
    %v703 = vadd.f32 %v701, %v702
    %v704 = vrot.slane %v703, 2
    %v705 = vadd.f32 %v703, %v704
    %v706 = vrot.slane %v705, 1
    %v707 = vadd.f32 %v705, %v706
    %v708 = vsel %vm85, %v606, 0.0
    %v709 = vrot.slane %v708, 4
    %v710 = vadd.f32 %v708, %v709
    %v711 = vrot.slane %v710, 2
    %v712 = vadd.f32 %v710, %v711
    %v713 = vrot.slane %v712, 1
    %v714 = vadd.f32 %v712, %v713
    %v715 = vsel %vm85, %v607, 0.0
    %v716 = vrot.slane %v715, 4
    %v717 = vadd.f32 %v715, %v716
    %v718 = vrot.slane %v717, 2
    %v719 = vadd.f32 %v717, %v718
    %v720 = vrot.slane %v719, 1
    %v721 = vadd.f32 %v719, %v720
    %v724 = vlaneseq
    %v725 = vshrl.u32 %v724, 7
    %v726 = vsub.s32 0, %v725
    %v727 = vrot.slane %v608, %v726
    %v728 = vlaneseq
    %v729 = vshrl.u32 %v728, 7
    %v730 = vsub.s32 1, %v729
    %v731 = vrot.slane %v608, %v730
    %v732 = vlaneseq
    %v733 = vshrl.u32 %v732, 7
    %v734 = vsub.s32 2, %v733
    %v735 = vrot.slane %v608, %v734
    %v736 = vlaneseq
    %v737 = vshrl.u32 %v736, 7
    %v738 = vsub.s32 3, %v737
    %v739 = vrot.slane %v608, %v738
    %v740 = vlaneseq
    %v741 = vshrl.u32 %v740, 7
    %v742 = vsub.s32 4, %v741
    %v743 = vrot.slane %v608, %v742
    %v744 = vlaneseq
    %v745 = vshrl.u32 %v744, 7
    %v746 = vsub.s32 5, %v745
    %v747 = vrot.slane %v608, %v746
    %v748 = vlaneseq
    %v749 = vshrl.u32 %v748, 7
    %v750 = vsub.s32 6, %v749
    %v751 = vrot.slane %v608, %v750
    %v752 = vlaneseq
    %v753 = vshrl.u32 %v752, 7
    %v754 = vsub.s32 7, %v753
    %v755 = vrot.slane %v608, %v754
    %v756 = vlaneseq
    %v757 = vshrl.u32 %v756, 7
    %v758 = vsub.s32 0, %v757
    %v759 = vrot.slane %v609, %v758
    %v760 = vlaneseq
    %v761 = vshrl.u32 %v760, 7
    %v762 = vsub.s32 1, %v761
    %v763 = vrot.slane %v609, %v762
    %v764 = vlaneseq
    %v765 = vshrl.u32 %v764, 7
    %v766 = vsub.s32 2, %v765
    %v767 = vrot.slane %v609, %v766
    %v768 = vlaneseq
    %v769 = vshrl.u32 %v768, 7
    %v770 = vsub.s32 3, %v769
    %v771 = vrot.slane %v609, %v770
    %v772 = vlaneseq
    %v773 = vshrl.u32 %v772, 7
    %v774 = vsub.s32 4, %v773
    %v775 = vrot.slane %v609, %v774
    %v776 = vlaneseq
    %v777 = vshrl.u32 %v776, 7
    %v778 = vsub.s32 5, %v777
    %v779 = vrot.slane %v609, %v778
    %v780 = vlaneseq
    %v781 = vshrl.u32 %v780, 7
    %v782 = vsub.s32 6, %v781
    %v783 = vrot.slane %v609, %v782
    %v784 = vlaneseq
    %v785 = vshrl.u32 %v784, 7
    %v786 = vsub.s32 7, %v785
    %v787 = vrot.slane %v609, %v786
    %v804 = vmul.f32 %v616, %v727
    %v805 = vmul.f32 %v623, %v731
    %v806 = vmul.f32 %v630, %v735
    %v807 = vmul.f32 %v637, %v739
    %v808 = vmul.f32 %v644, %v743
    %v809 = vmul.f32 %v651, %v747
    %v810 = vmul.f32 %v658, %v751
    %v811 = vmul.f32 %v665, %v755
    %v812 = vmul.f32 %v672, %v759
    %v813 = vmul.f32 %v679, %v763
    %v814 = vmul.f32 %v686, %v767
    %v815 = vmul.f32 %v693, %v771
    %v816 = vmul.f32 %v700, %v775
    %v817 = vmul.f32 %v707, %v779
    %v818 = vmul.f32 %v714, %v783
    %v819 = vmul.f32 %v721, %v787
    %vm820 = vcmask 1040384
    %v821 = vsel %vm820, %v804, 0.0
    %v822 = vsel %vm820, %v805, 0.0
    %v823 = vadd.f32 %v821, %v822
    %v824 = vsel %vm820, %v806, 0.0
    %v825 = vadd.f32 %v823, %v824
    %v826 = vsel %vm820, %v807, 0.0
    %v827 = vadd.f32 %v825, %v826
    %v828 = vsel %vm820, %v808, 0.0
    %v829 = vadd.f32 %v827, %v828
    %v830 = vsel %vm820, %v809, 0.0
    %v831 = vadd.f32 %v829, %v830
    %v832 = vsel %vm820, %v810, 0.0
    %v833 = vadd.f32 %v831, %v832
    %v834 = vsel %vm820, %v811, 0.0
    %v835 = vadd.f32 %v833, %v834
    %v836 = vsel %vm820, %v812, 0.0
    %v837 = vadd.f32 %v835, %v836
    %v838 = vsel %vm820, %v813, 0.0
    %v839 = vadd.f32 %v837, %v838
    %v840 = vsel %vm820, %v814, 0.0
    %v841 = vadd.f32 %v839, %v840
    %v842 = vsel %vm820, %v815, 0.0
    %v843 = vadd.f32 %v841, %v842
    %v844 = vsel %vm820, %v816, 0.0
    %v845 = vadd.f32 %v843, %v844
    %v846 = vsel %vm820, %v817, 0.0
    %v847 = vadd.f32 %v845, %v846
    %v848 = vsel %vm820, %v818, 0.0
    %v849 = vadd.f32 %v847, %v848
    %v850 = vsel %vm820, %v819, 0.0
    %v851 = vadd.f32 %v849, %v850
    %852 = vadd.xlane.f32.xlu0 %v851
    %v853 = vpop.xlane.xlu0 %852
    %v854 = vsub.f32 0.0, %v853
    %vm855 = vcmask 0
    %856 = vst.msk [vmem:[#allocation8] sm:$0x1] %vm855, %v854
    // Predicated region
    $region30: #{tpu_custom_call.1} parent=1 // pred_check
      _
    $region31: #{tpu_custom_call.1} parent=1 // pred_check_branch
      %858 = sbr.rel (0) target = $region33
    $region32: #{tpu_custom_call.1} parent=1 // pred_region
      %s860 = ssub.s32 16, 16
      %861 = vsyncadd [#allocation4], %s860
      %s863 = sshll.u32 [#allocation8], 4
      %s864 = int_to_ptr.vmem [resolvable:$true] %s863
      %866 = dma.vmem_to_hbm [thread:$0]  %s864, 16, %s4, [#allocation4]
    $region33: #{tpu_custom_call.1} parent=1 // pred_fallthru
      _
    // Predicated region
    $region34: #{tpu_custom_call.1} parent=1 // pred_check
      _
    $region35: #{tpu_custom_call.1} parent=1 // pred_check_branch
      %868 = sbr.rel (0) target = $region37
    $region36: #{tpu_custom_call.1} parent=1 // pred_region
      %869 = dma.done [#allocation4], 16
    $region37: #{tpu_custom_call.1} parent=1 // pred_fallthru
      _
    %870 = vsyncpa [#allocation3], 1
    %871 = vsyncpa [#allocation6], 1
    %872 = vsyncpa [#allocation4], 1

</llo_original>
